<compile_context>
chip_gen: v6e
topology: v6e:2x2x1
jax: 0.10.0
libtpu: 0.0.40
codegen_flags: <defaults>
</compile_context>

<pallas_src>
import functools
from typing import NamedTuple

import jax
import jax.numpy as jnp
from jax.experimental import pallas as pl
from jax.experimental.pallas import tpu as pltpu

L2_EPS = 1e-8  # matches l2norm(..., eps=1e-08)


def _round_up(x, m):
    return ((x + m - 1) // m) * m


def _physical_vmem_bytes():
    try:
        return int(pltpu.get_tpu_info().vmem_capacity_bytes)
    except Exception:
        return 64 << 20  # conservative fallback: v7x per-TensorCore VMEM


def _epilogue(feats_f32, b_ref, no_imgnorm):
    feats = feats_f32 + b_ref[...].astype(jnp.float32)
    if not no_imgnorm:
        # l2norm over last dim: X / (sqrt(sum(X^2, -1, keepdims)) + eps).
        # Zero-padded embed columns (zero-padded W/b) contribute exactly 0.
        norm = jnp.sqrt(jnp.sum(feats * feats, axis=-1, keepdims=True)) + L2_EPS
        feats = feats * (1.0 / norm)  # exact reciprocal keeps 1e-5 tolerance
    return feats


def _kernel_fused(x_ref, w_ref, b_ref, o_ref, *, no_imgnorm):
    # x: (TM, Kp)  w: (Kp, Ep)  b: (1, Ep)  o: (TM, Ep); single K tile.
    feats = jnp.dot(x_ref[...], w_ref[...], preferred_element_type=jnp.float32)
    o_ref[...] = _epilogue(feats, b_ref, no_imgnorm).astype(o_ref.dtype)


def _kernel_ksplit(x_ref, w_ref, b_ref, o_ref, acc_ref, *, no_imgnorm):
    # Grid (M tiles, K tiles); K axis is the reduction ("arbitrary").
    k = pl.program_id(1)

    @pl.when(k == 0)
    def _():
        acc_ref[...] = jnp.zeros_like(acc_ref)

    acc_ref[...] += jnp.dot(x_ref[...], w_ref[...],
                            preferred_element_type=jnp.float32)

    @pl.when(k == pl.num_programs(1) - 1)
    def _():
        o_ref[...] = _epilogue(acc_ref[...], b_ref, no_imgnorm).astype(o_ref.dtype)


class PreparedParams(NamedTuple):
    w_pad: jax.Array      # (K_pad, E_pad) transposed, zero-padded weight
    b_pad: jax.Array      # (1, E_pad) zero-padded bias
    img_dim: int
    embed_size: int


def prepare_params(weight, bias):
    """One-time transpose + lane-dense (128-multiple) zero-padding of W/b."""
    embed_size, img_dim = weight.shape
    k_pad = _round_up(img_dim, 128)
    e_pad = _round_up(embed_size, 128)
    w_t = weight.T  # (img_dim, embed_size)
    if (k_pad, e_pad) != w_t.shape:
        w_t = jnp.pad(w_t, ((0, k_pad - img_dim), (0, e_pad - embed_size)))
    b2d = bias.reshape(1, embed_size)
    if e_pad != embed_size:
        b2d = jnp.pad(b2d, ((0, 0), (0, e_pad - embed_size)))
    return PreparedParams(w_t, b2d, img_dim, embed_size)


def _choose_tile_m(m, requested):
    tm = max(8, min(requested, _round_up(m, 8)))
    if tm >= 128:
        tm = (tm // 128) * 128  # full MXU panels / v5e alignment
    # v7x: M axis is "parallel" across 2 TensorCores -> prefer >= 2 tiles.
    while -(-m // tm) == 1 and tm > 128:
        tm //= 2
    return tm


def _choose_tile_k(k_pad, e_pad, w_itemsize, requested=None):
    if requested is None:
        # Keep the whole weight resident (single-buffered) when it fits a
        # conservative fraction of physical VMEM; otherwise split K.
        budget = int(0.5 * _physical_vmem_bytes())
        if k_pad * e_pad * w_itemsize <= budget:
            return k_pad
        requested = max(128, budget // (2 * e_pad * w_itemsize))
    t = max(128, min(_round_up(requested, 128), k_pad))
    t = (t // 128) * 128
    while k_pad % t:  # tile_k must divide K_pad (no ragged K blocks -> no NaN)
        t -= 128
    return t


def _vmem_limit_bytes(tile_m, tile_k, e_pad, n_k,
                      x_dtype, w_dtype, b_dtype, out_dtype):
    isz = lambda dt: jnp.dtype(dt).itemsize
    x_bytes = 2 * tile_m * tile_k * isz(x_dtype)       # streamed, double-buffered
    o_bytes = 2 * tile_m * e_pad * isz(out_dtype)      # streamed, double-buffered
    w_bufs = 1 if n_k == 1 else 2                      # resident vs streamed
    w_bytes = w_bufs * tile_k * e_pad * isz(w_dtype)
    b_bytes = e_pad * isz(b_dtype)                     # resident (Buffered(1))
    acc_bytes = tile_m * e_pad * 4 if n_k > 1 else 0
    est = x_bytes + o_bytes + w_bytes + b_bytes + acc_bytes + (4 << 20)
    cap = int(0.85 * _physical_vmem_bytes())           # never above physical VMEM
    return int(max(min(est, cap), 4 << 20))


def encoder_image_precomp_prepared(images, params, *, no_imgnorm=False,
                                   tile_m=512, tile_k=None):
    """images: (..., img_dim); params: PreparedParams from prepare_params()."""
    img_dim, embed_size = params.img_dim, params.embed_size
    assert images.shape[-1] == img_dim
    lead_shape = images.shape[:-1]

    x2d = images.reshape(-1, img_dim)
    m = x2d.shape[0]
    k_pad, e_pad = params.w_pad.shape

    # K must be zero-padded in x (pad-column garbage x zero weights -> NaN risk).
    # M is left ragged; Pallas masks the tail block's store.
    if k_pad != img_dim:
        x2d = jnp.pad(x2d, ((0, 0), (0, k_pad - img_dim)))

    tm = _choose_tile_m(m, tile_m)
    tk = _choose_tile_k(k_pad, e_pad, params.w_pad.dtype.itemsize, tile_k)
    n_m = -(-m // tm)
    n_k = k_pad // tk

    out_dtype = images.dtype
    vmem_limit = _vmem_limit_bytes(tm, tk, e_pad, n_k, x2d.dtype,
                                   params.w_pad.dtype, params.b_pad.dtype,
                                   out_dtype)

    if n_k == 1:
        kernel = functools.partial(_kernel_fused, no_imgnorm=no_imgnorm)
        grid = (n_m,)
        in_specs = [
            pl.BlockSpec((tm, k_pad), lambda i: (i, 0)),
            # Resident, grid-invariant weight/bias: single pipeline buffer.
            pl.BlockSpec((k_pad, e_pad), lambda i: (0, 0),
                         pipeline_mode=pl.Buffered(1)),
            pl.BlockSpec((1, e_pad), lambda i: (0, 0),
                         pipeline_mode=pl.Buffered(1)),
        ]
        out_specs = pl.BlockSpec((tm, e_pad), lambda i: (i, 0))
        scratch_shapes = []
        dim_sem = ("parallel",)
    else:
        kernel = functools.partial(_kernel_ksplit, no_imgnorm=no_imgnorm)
        grid = (n_m, n_k)
        in_specs = [
            pl.BlockSpec((tm, tk), lambda i, k: (i, k)),
            pl.BlockSpec((tk, e_pad), lambda i, k: (k, 0)),
            pl.BlockSpec((1, e_pad), lambda i, k: (0, 0),
                         pipeline_mode=pl.Buffered(1)),
        ]
        out_specs = pl.BlockSpec((tm, e_pad), lambda i, k: (i, 0))
        scratch_shapes = [pltpu.VMEM((tm, e_pad), jnp.float32)]
        dim_sem = ("parallel", "arbitrary")

    out = pl.pallas_call(
        kernel,
        out_shape=jax.ShapeDtypeStruct((m, e_pad), out_dtype),
        grid_spec=pltpu.PrefetchScalarGridSpec(
            num_scalar_prefetch=0,
            grid=grid,
            in_specs=in_specs,
            out_specs=out_specs,
            scratch_shapes=scratch_shapes,
        ),
        compiler_params=pltpu.CompilerParams(
            dimension_semantics=dim_sem,
            vmem_limit_bytes=vmem_limit,
        ),
    )(x2d, params.w_pad, params.b_pad)

    if e_pad != embed_size:
        out = out[:, :embed_size]
    return out.reshape(*lead_shape, embed_size)


def encoder_image_precomp(images, weight, bias, *, no_imgnorm=False,
                          tile_m=512, tile_k=None):
    """Convenience entry (weight: (embed_size, img_dim), bias: (embed_size,)).

    For repeated calls, hoist prepare_params() and call the *_prepared entry.
    """
    params = prepare_params(weight, bias)
    return encoder_image_precomp_prepared(images, params, no_imgnorm=no_imgnorm,
                                          tile_m=tile_m, tile_k=tile_k)


def init_params(key, img_dim, embed_size):
    """Deterministic init mirroring EncoderImagePrecomp.init_weights."""
    r = jnp.sqrt(6.0) / jnp.sqrt(jnp.float32(img_dim + embed_size))
    weight = jax.random.uniform(
        key, (embed_size, img_dim), dtype=jnp.float32, minval=-r, maxval=r)
    bias = jnp.zeros((embed_size,), dtype=jnp.float32)
    return weight, bias


def _reference(images, weight, bias, no_imgnorm=False):
    x = images.astype(jnp.float32)
    w = weight.astype(jnp.float32)
    b = bias.astype(jnp.float32)
    feats = x @ w.T + b
    if not no_imgnorm:
        norm = jnp.sqrt(jnp.sum(feats * feats, axis=-1, keepdims=True)) + L2_EPS
        feats = feats / norm
    return feats.astype(images.dtype)


# TODO(synk): load_state_dict / nn.Module parameter plumbing has no Pallas
# equivalent (framework state handling, not part of the forward pass).

if __name__ == "__main__":
    key = jax.random.PRNGKey(0)
    k_img, k_w, k_img2, k_w2 = jax.random.split(key, 4)

    # --- fused (single K tile) path, f32 ---
    batch, n_regions, img_dim, embed_size = 2, 8, 32, 64
    images = jax.random.normal(k_img, (batch, n_regions, img_dim), dtype=jnp.float32)
    weight, bias = init_params(k_w, img_dim, embed_size)
    params = prepare_params(weight, bias)  # hoisted once (perf feedback)

    out = jax.block_until_ready(encoder_image_precomp_prepared(images, params))
    ref = _reference(images, weight, bias)
    assert out.shape == (batch, n_regions, embed_size)
    assert jnp.allclose(out, ref, atol=1e-5, rtol=1e-5)

    # --- ragged M (no M padding; Pallas masks the tail block's store) ---
    images_r = images[:, :7, :]  # m = 14, not a multiple of 8
    out_r = jax.block_until_ready(encoder_image_precomp_prepared(images_r, params))
    ref_r = _reference(images_r, weight, bias)
    assert out_r.shape == (batch, 7, embed_size)
    assert jnp.allclose(out_r, ref_r, atol=1e-5, rtol=1e-5)

    # --- bf16 path: native-dtype MXU feed, f32 accumulate ---
    images_bf = images.astype(jnp.bfloat16)
    weight_bf = weight.astype(jnp.bfloat16)
    bias_bf = bias.astype(jnp.bfloat16)
    params_bf = prepare_params(weight_bf, bias_bf)
    out_bf = jax.block_until_ready(
        encoder_image_precomp_prepared(images_bf, params_bf))
    ref_bf = _reference(images_bf, weight_bf, bias_bf)
    assert out_bf.dtype == jnp.bfloat16
    assert jnp.allclose(out_bf.astype(jnp.float32), ref_bf.astype(jnp.float32),
                        atol=2e-2, rtol=2e-2)

    # --- K-split path (accumulator kernel) forced via tile_k ---
    img_dim2, embed_size2 = 256, 128
    images2 = jax.random.normal(
        k_img2, (batch, n_regions, img_dim2), dtype=jnp.float32)
    weight2, bias2 = init_params(k_w2, img_dim2, embed_size2)
    out2 = jax.block_until_ready(
        encoder_image_precomp(images2, weight2, bias2, tile_k=128))
    ref2 = _reference(images2, weight2, bias2)
    assert jnp.allclose(out2, ref2, atol=1e-5, rtol=1e-5)

    # --- no_imgnorm variant ---
    out_nn = jax.block_until_ready(
        encoder_image_precomp_prepared(images, params, no_imgnorm=True))
    ref_nn = _reference(images, weight, bias, no_imgnorm=True)
    assert jnp.allclose(out_nn, ref_nn, atol=1e-5, rtol=1e-5)

    print("KERNEL_OK")
</pallas_src>

<mosaic_0001>
module attributes {stable_mosaic.version = 11 : i64} {
  func.func @_kernel_fused(%arg0: i32, %arg1: memref<16x128xf32, #tpu.memory_space<vmem>>, %arg2: memref<128x128xf32, #tpu.memory_space<vmem>>, %arg3: memref<1x128xf32, #tpu.memory_space<vmem>>, %arg4: memref<16x128xf32, #tpu.memory_space<vmem>>) attributes {dimension_semantics = [#tpu.dimension_semantics<parallel>], iteration_bounds = array<i64: 1>, scalar_prefetch = 0 : i64, scratch_operands = 0 : i64, tpu.core_type = #tpu.core_type<tc>, window_params = [{transform_indices = @transform_0, window_bounds = array<i64: 16, 128>}, {pipeline_mode = #tpu.pipeline_mode<synchronous>, transform_indices = @transform_1, window_bounds = array<i64: 128, 128>}, {pipeline_mode = #tpu.pipeline_mode<synchronous>, transform_indices = @transform_2, window_bounds = array<i64: 1, 128>}, {transform_indices = @transform_3, window_bounds = array<i64: 16, 128>}]} {
    %c0 = arith.constant 0 : index
    %c0_0 = arith.constant 0 : index
    %0 = vector.load %arg1[%c0, %c0_0] : memref<16x128xf32, #tpu.memory_space<vmem>>, vector<16x128xf32>
    %c0_1 = arith.constant 0 : index
    %c0_2 = arith.constant 0 : index
    %1 = vector.load %arg2[%c0_1, %c0_2] : memref<128x128xf32, #tpu.memory_space<vmem>>, vector<128x128xf32>
    %cst = arith.constant dense<0.000000e+00> : vector<16x128xf32>
    %2 = tpu.matmul %0, %1, %cst {dimension_numbers = #tpu.dot_dimension_numbers<[1], [0], [0], [1], [0, 0, 1, 1], [], []>} : vector<16x128xf32>, vector<128x128xf32>, vector<16x128xf32> -> vector<16x128xf32>
    %c0_3 = arith.constant 0 : index
    %c0_4 = arith.constant 0 : index
    %3 = vector.load %arg3[%c0_3, %c0_4] : memref<1x128xf32, #tpu.memory_space<vmem>>, vector<1x128xf32>
    %4 = vector.broadcast %3 : vector<1x128xf32> to vector<16x128xf32>
    %5 = arith.addf %2, %4 : vector<16x128xf32>
    %6 = arith.mulf %5, %5 : vector<16x128xf32>
    %cst_5 = arith.constant dense<0.000000e+00> : vector<16xf32>
    %7 = vector.multi_reduction <add>, %6, %cst_5 [1] : vector<16x128xf32> to vector<16xf32>
    %8 = vector.shape_cast %7 : vector<16xf32> to vector<16x1xf32>
    %9 = math.sqrt %8 : vector<16x1xf32>
    %cst_6 = arith.constant 9.99999993E-9 : f32
    %10 = vector.broadcast %cst_6 : f32 to vector<16x1xf32>
    %11 = arith.addf %9, %10 : vector<16x1xf32>
    %cst_7 = arith.constant 1.000000e+00 : f32
    %12 = vector.broadcast %cst_7 : f32 to vector<16x1xf32>
    %13 = arith.divf %12, %11 : vector<16x1xf32>
    %14 = vector.broadcast %13 : vector<16x1xf32> to vector<16x128xf32>
    %15 = arith.mulf %5, %14 : vector<16x128xf32>
    %c0_8 = arith.constant 0 : index
    %c0_9 = arith.constant 0 : index
    %16 = vector.load %arg4[%c0_8, %c0_9] : memref<16x128xf32, #tpu.memory_space<vmem>>, vector<16x128xf32>
    tpu.vector_store %arg4[%c0_8, %c0_9], %15 {strides = array<i32>} : memref<16x128xf32, #tpu.memory_space<vmem>>, vector<16x128xf32>,
    return
  }
  func.func @transform_0(%arg0: i32) -> (i32, i32) {
    %c0_i32 = arith.constant 0 : i32
    %c0_i32_0 = arith.constant 0 : i32
    return %arg0, %c0_i32 : i32, i32
  }
  func.func @transform_1(%arg0: i32) -> (i32, i32) {
    %c0_i32 = arith.constant 0 : i32
    %c0_i32_0 = arith.constant 0 : i32
    %c0_i32_1 = arith.constant 0 : i32
    return %c0_i32, %c0_i32_0 : i32, i32
  }
  func.func @transform_2(%arg0: i32) -> (i32, i32) {
    %c0_i32 = arith.constant 0 : i32
    %c0_i32_0 = arith.constant 0 : i32
    %c0_i32_1 = arith.constant 0 : i32
    return %c0_i32, %c0_i32_0 : i32, i32
  }
  func.func @transform_3(%arg0: i32) -> (i32, i32) {
    %c0_i32 = arith.constant 0 : i32
    %c0_i32_0 = arith.constant 0 : i32
    return %arg0, %c0_i32 : i32, i32
  }
}

</mosaic_0001>

<llo_original>
// kernel: tpu_custom_call.1
$region0: #{tpu_custom_call.1}
  #allocation0 [shape = 'u32[]', space=smem, size = 0x4, offset = 0x4, fixed_abs, tag = 'smem constant byte address 0x4 - core index']
  #allocation1 [shape = 'u32[144,128]{1,0:T(1,128)}', space=vmem, size = 0x12000, scoped, tag = 'internal scratch']
  %s0 = inlined_call_operand.hbm [shape: f32[16,128], index: 0, kind: input, shape index: {}]
  %s1 = inlined_call_operand.hbm [shape: f32[128,128], index: 1, kind: input, shape index: {}]
  %s2 = inlined_call_operand.vmem [shape: f32[1,128], index: 2, kind: input, shape index: {}]
  %s3 = inlined_call_operand.hbm [shape: f32[16,128], index: 3, kind: output, shape index: {}]
  %s4 = sld [smem:[#allocation0]]
  $region30: #{tpu_custom_call.1} parent=0
    _
  %s6 = ssub.s32 1, %s4
  %s7 = scalar_select 0, %s6, %s4
  $region1: #{tpu_custom_call.1} parent=0
    #allocation2 [shape = 'u8[8192]{0}', space=vmem, size = 0x2000, scoped, tag = 'input window, operand 0, single buffered']
    #allocation3 [shape = 's32[1]{0}', space=sflag, size = 0x4, scoped, tag = 'scoped memory for tpu_custom_call.1']
    #allocation4 [shape = 's32[1]{0}', space=sflag, size = 0x4, scoped, tag = 'scoped memory for tpu_custom_call.1']
    #allocation5 [shape = 'u8[65536]{0}', space=vmem, size = 0x10000, scoped, tag = 'input window, operand 1, single buffered']
    #allocation6 [shape = 's32[1]{0}', space=sflag, size = 0x4, scoped, tag = 'scoped memory for tpu_custom_call.1']
    #allocation7 [shape = 'u8[8192]{0}', space=vmem, size = 0x2000, scoped, tag = 'output window, operand 0, single buffered']
    %8 = vsyncpa [#allocation3], 0
    %9 = vsyncpa [#allocation6], 0
    %10 = vsyncpa [#allocation4], 0
    // Predicated region
    $region2: #{tpu_custom_call.1} parent=1 // pred_check
      _
    $region3: #{tpu_custom_call.1} parent=1 // pred_check_branch
      %12 = sbr.rel (0) target = $region5
    $region4: #{tpu_custom_call.1} parent=1 // pred_region
      %s14 = ssub.s32 256, 256
      %15 = vsyncadd [#allocation3], %s14
      %s16 = sshll.u32 [#allocation2], 4
      %s17 = int_to_ptr.vmem [resolvable:$true] %s16
      %22 = dma.hbm_to_vmem [thread:$0]  %s0, 256, %s17, [#allocation3], 128, 128, 8
    $region5: #{tpu_custom_call.1} parent=1 // pred_fallthru
      _
    // Predicated region
    $region6: #{tpu_custom_call.1} parent=1 // pred_check
      _
    $region7: #{tpu_custom_call.1} parent=1 // pred_check_branch
      %24 = sbr.rel (0) target = $region9
    $region8: #{tpu_custom_call.1} parent=1 // pred_region
      %s26 = ssub.s32 2048, 2048
      %27 = vsyncadd [#allocation6], %s26
      %s28 = sshll.u32 [#allocation5], 4
      %s29 = int_to_ptr.vmem [resolvable:$true] %s28
      %34 = dma.hbm_to_vmem [thread:$0]  %s1, 2048, %s29, [#allocation6], 128, 128, 8
    $region9: #{tpu_custom_call.1} parent=1 // pred_fallthru
      _
    // Predicated region
    $region10: #{tpu_custom_call.1} parent=1 // pred_check
      _
    $region11: #{tpu_custom_call.1} parent=1 // pred_check_branch
      %36 = sbr.rel (0) target = $region13
    $region12: #{tpu_custom_call.1} parent=1 // pred_region
      _
    $region13: #{tpu_custom_call.1} parent=1 // pred_fallthru
      _
    // Predicated region
    $region14: #{tpu_custom_call.1} parent=1 // pred_check
      _
    $region15: #{tpu_custom_call.1} parent=1 // pred_check_branch
      %38 = sbr.rel (0) target = $region17
    $region16: #{tpu_custom_call.1} parent=1 // pred_region
      %39 = dma.done [#allocation3], 256
    $region17: #{tpu_custom_call.1} parent=1 // pred_fallthru
      _
    // Predicated region
    $region18: #{tpu_custom_call.1} parent=1 // pred_check
      _
    $region19: #{tpu_custom_call.1} parent=1 // pred_check_branch
      %41 = sbr.rel (0) target = $region21
    $region20: #{tpu_custom_call.1} parent=1 // pred_region
      %42 = dma.done [#allocation6], 2048
    $region21: #{tpu_custom_call.1} parent=1 // pred_fallthru
      _
    %v43 = vld [vmem:[#allocation2] sm:$0xff]
    %v44 = vld [vmem:[#allocation2 + $0x8] sm:$0xff]
    %v45 = vld [vmem:[#allocation5] sm:$0xff]
    %v46 = vld [vmem:[#allocation5 + $0x8] sm:$0xff]
    %v47 = vld [vmem:[#allocation5 + $0x10] sm:$0xff]
    %v48 = vld [vmem:[#allocation5 + $0x18] sm:$0xff]
    %v49 = vld [vmem:[#allocation5 + $0x20] sm:$0xff]
    %v50 = vld [vmem:[#allocation5 + $0x28] sm:$0xff]
    %v51 = vld [vmem:[#allocation5 + $0x30] sm:$0xff]
    %v52 = vld [vmem:[#allocation5 + $0x38] sm:$0xff]
    %v53 = vld [vmem:[#allocation5 + $0x40] sm:$0xff]
    %v54 = vld [vmem:[#allocation5 + $0x48] sm:$0xff]
    %v55 = vld [vmem:[#allocation5 + $0x50] sm:$0xff]
    %v56 = vld [vmem:[#allocation5 + $0x58] sm:$0xff]
    %v57 = vld [vmem:[#allocation5 + $0x60] sm:$0xff]
    %v58 = vld [vmem:[#allocation5 + $0x68] sm:$0xff]
    %v59 = vld [vmem:[#allocation5 + $0x70] sm:$0xff]
    %v60 = vld [vmem:[#allocation5 + $0x78] sm:$0xff]
    %v61 = vld [vmem:[%s2] sm:$0x1]
    %v63 = vlaneseq
    %v64 = vshrl.u32 %v63, 7
    %v65 = vsub.s32 0, %v64
    %v66 = vrot.slane %v61, %v65
    %68 = vmatprep.subr.mxu0 0.0
    %69 = vmatpush1.msra.mxu0 %v60
    %70 = vmatprep.subr.mxu0 0.0
    %71 = vmatpush1.msra.mxu0 %v59
    %72 = vmatprep.subr.mxu0 0.0
    %73 = vmatpush1.msra.mxu0 %v58
    %74 = vmatprep.subr.mxu0 0.0
    %75 = vmatpush1.msra.mxu0 %v57
    %76 = vmatprep.subr.mxu0 0.0
    %77 = vmatpush1.msra.mxu0 %v56
    %78 = vmatprep.subr.mxu0 0.0
    %79 = vmatpush1.msra.mxu0 %v55
    %80 = vmatprep.subr.mxu0 0.0
    %81 = vmatpush1.msra.mxu0 %v54
    %82 = vmatprep.subr.mxu0 0.0
    %83 = vmatpush1.msra.mxu0 %v53
    %84 = vmatprep.subr.mxu0 0.0
    %85 = vmatpush1.msra.mxu0 %v52
    %86 = vmatprep.subr.mxu0 0.0
    %87 = vmatpush1.msra.mxu0 %v51
    %88 = vmatprep.subr.mxu0 0.0
    %89 = vmatpush1.msra.mxu0 %v50
    %90 = vmatprep.subr.mxu0 0.0
    %91 = vmatpush1.msra.mxu0 %v49
    %92 = vmatprep.subr.mxu0 0.0
    %93 = vmatpush1.msra.mxu0 %v48
    %94 = vmatprep.subr.mxu0 0.0
    %95 = vmatpush1.msra.mxu0 %v47
    %96 = vmatprep.subr.mxu0 0.0
    %97 = vmatpush1.msra.mxu0 %v46
    %98 = vmatprep.subr.mxu0 0.0
    %99 = vmatpush1.msra.mxu0 %v45
    %100 = vmatprep.subr.mxu0 0.0
    %101 = vmatpush2.msra.mxu0 0.0
    %102 = vmatprep.subr.mxu0 0.0
    %103 = vmatpush2.msra.mxu0 0.0
    %104 = vmatprep.subr.mxu0 0.0
    %105 = vmatpush2.msra.mxu0 0.0
    %106 = vmatprep.subr.mxu0 0.0
    %107 = vmatpush2.msra.mxu0 0.0
    %108 = vmatprep.subr.mxu0 0.0
    %109 = vmatpush2.msra.mxu0 0.0
    %110 = vmatprep.subr.mxu0 0.0
    %111 = vmatpush2.msra.mxu0 0.0
    %112 = vmatprep.subr.mxu0 0.0
    %113 = vmatpush2.msra.mxu0 0.0
    %114 = vmatprep.subr.mxu0 0.0
    %115 = vmatpush2.msra.mxu0 0.0
    %116 = vmatprep.subr.mxu0 0.0
    %117 = vmatpush2.msra.mxu0 0.0
    %118 = vmatprep.subr.mxu0 0.0
    %119 = vmatpush2.msra.mxu0 0.0
    %120 = vmatprep.subr.mxu0 0.0
    %121 = vmatpush2.msra.mxu0 0.0
    %122 = vmatprep.subr.mxu0 0.0
    %123 = vmatpush2.msra.mxu0 0.0
    %124 = vmatprep.subr.mxu0 0.0
    %125 = vmatpush2.msra.mxu0 0.0
    %126 = vmatprep.subr.mxu0 0.0
    %127 = vmatpush2.msra.mxu0 0.0
    %128 = vmatprep.subr.mxu0 0.0
    %129 = vmatpush2.msra.mxu0 0.0
    %130 = vmatprep.subr.mxu0 0.0
    %131 = vmatpush2.msra.mxu0 0.0
    %132 = vmatprep.mubr.f32.mxu0 0.0
    %133 = vmatmul.mubr.f32.gmra.mxu0 %v43
    %v134 = vpop.f32.mrf.mxu0
    %v135 = vadd.f32 %v66, %v134
    %v136 = vpop.f32.mrf.mxu0
    %137 = vmatprep.mubr.f32.mxu0 0.0
    %138 = vmatmul.mubr.f32.gmra.mxu0 %v44
    %v139 = vpop.f32.mrf.mxu0
    %v140 = vadd.f32 %v66, %v139
    %v141 = vpop.f32.mrf.mxu0
    %142 = vdwg.mxu0
    %v143 = vmul.f32 %v135, %v135
    %v144 = vmul.f32 %v140, %v140
    %145 = vadd.xlane.f32.xlu0 %v143
    %v146 = vpop.xlane.xlu0 %145
    %147 = vadd.xlane.f32.xlu0 %v144
    %v148 = vpop.xlane.xlu0 %147
    %v149 = vrsqrt.pop %v146
    %v150 = vmul.f32 %v146, %v149
    %vm151 = vcmp.eq.f32.partialorder %v146, inf
    %v152 = vsel %vm151, %v146, %v150
    %vm153 = vcmp.eq.f32.partialorder %v146, 0.0
    %v154 = vand.u32 %v146, 2147483648
    %v155 = vsel %vm153, %v154, %v152
    %v156 = vrsqrt.pop %v148
    %v157 = vmul.f32 %v148, %v156
    %vm158 = vcmp.eq.f32.partialorder %v148, inf
    %v159 = vsel %vm158, %v148, %v157
    %vm160 = vcmp.eq.f32.partialorder %v148, 0.0
    %v161 = vand.u32 %v148, 2147483648
    %v162 = vsel %vm160, %v161, %v159
    %v163 = vadd.f32 %v155, 1e-08
    %v164 = vadd.f32 %v162, 1e-08
    %v165 = vrcp.pop %v163
    %v166 = vmul.f32 1.0, %v165
    %v167 = vrcp.pop %v164
    %v168 = vmul.f32 1.0, %v167
    %v169 = vmul.f32 %v135, %v166
    %v170 = vmul.f32 %v140, %v168
    %171 = vst [vmem:[#allocation7] sm:$0xff] %v169
    %172 = vst [vmem:[#allocation7 + $0x8] sm:$0xff] %v170
    // Predicated region
    $region22: #{tpu_custom_call.1} parent=1 // pred_check
      _
    $region23: #{tpu_custom_call.1} parent=1 // pred_check_branch
      %174 = sbr.rel (0) target = $region25
    $region24: #{tpu_custom_call.1} parent=1 // pred_region
      %s176 = ssub.s32 256, 256
      %177 = vsyncadd [#allocation4], %s176
      %s178 = sshll.u32 [#allocation7], 4
      %s179 = int_to_ptr.vmem [resolvable:$true] %s178
      %184 = dma.vmem_to_hbm [thread:$0]  %s179, 256, %s3, [#allocation4], 128, 128, 8
    $region25: #{tpu_custom_call.1} parent=1 // pred_fallthru
      _
    // Predicated region
    $region26: #{tpu_custom_call.1} parent=1 // pred_check
      _
    $region27: #{tpu_custom_call.1} parent=1 // pred_check_branch
      %186 = sbr.rel (0) target = $region29
    $region28: #{tpu_custom_call.1} parent=1 // pred_region
      %187 = dma.done [#allocation4], 256
    $region29: #{tpu_custom_call.1} parent=1 // pred_fallthru
      _
    %188 = vsyncpa [#allocation3], 1
    %189 = vsyncpa [#allocation6], 1
    %190 = vsyncpa [#allocation4], 1

</llo_original>
